<compile_context>
chip_gen: v7x
topology: tpu7x:2x2x1
jax: 0.10.0
libtpu: 0.0.40
codegen_flags: <defaults>
</compile_context>

<pallas_src>
import functools

import jax
import jax.numpy as jnp
from jax import lax
from jax.experimental import pallas as pl
from jax.experimental.pallas import tpu as pltpu


# ----------------------------------------------------------------------------
# Generic lane-dense row-tiled matmul + bias:  Y = X @ W + b
# ----------------------------------------------------------------------------
def _dense_kernel(x_ref, w_ref, b_ref, o_ref):
    o_ref[...] = (jnp.dot(x_ref[...], w_ref[...],
                          preferred_element_type=jnp.float32)
                  + b_ref[...]).astype(o_ref.dtype)


def _dense(x2d, w, b, *, row_tile=512, out_dtype=jnp.float32):
    """x2d: (rows, K), w: (K, N), b: (1, N) -> (rows, N)."""
    rows, K = x2d.shape
    N = w.shape[1]
    # Row tile must be divisible by 8 or equal the full row count.
    tr = rows if rows <= row_tile else row_tile
    grid = (pl.cdiv(rows, tr),)
    return pl.pallas_call(
        _dense_kernel,
        out_shape=jax.ShapeDtypeStruct((rows, N), out_dtype),
        grid_spec=pltpu.PrefetchScalarGridSpec(
            num_scalar_prefetch=0,
            grid=grid,
            in_specs=[
                pl.BlockSpec((tr, K), lambda i: (i, 0)),   # X row tile
                pl.BlockSpec((K, N), lambda i: (0, 0)),    # W (grid-invariant)
                pl.BlockSpec((1, N), lambda i: (0, 0)),    # bias
            ],
            out_specs=pl.BlockSpec((tr, N), lambda i: (i, 0)),
        ),
        compiler_params=pltpu.CompilerParams(
            dimension_semantics=("parallel",)),   # row tiles are independent
    )(x2d, w, b)


# ----------------------------------------------------------------------------
# LSTM recurrence: T timesteps per grid iteration, (h, c) carried in VMEM.
# ----------------------------------------------------------------------------
def _lstm_recurrence_kernel(xg_ref, whh_ref, h0_ref, c0_ref,
                            hseq_ref, hn_ref, cn_ref,
                            h_sc, c_sc,
                            *, hidden_size, block_t, seq_len, mask_tail):
    blk = pl.program_id(0)

    # Initialize carried state from dec_hidden at the first block.
    @pl.when(blk == 0)
    def _():
        h_sc[...] = h0_ref[...]
        c_sc[...] = c0_ref[...]

    H = hidden_size
    w_hh = whh_ref[...]   # (H, 4H) hoisted: loaded once per block, not per step

    def step(s, carry):
        h, c = carry
        # Input-to-hidden contribution + bias was precomputed outside the
        # recurrence; only the H x 4H recurrent matmul is on the serial path.
        gates = xg_ref[s] + jnp.dot(h, w_hh,
                                    preferred_element_type=jnp.float32)
        # TODO(synk): for H a multiple of 128 these lane slices are tile
        # aligned (free); at small H they incur minor relayout work.
        i_g = jax.nn.sigmoid(gates[:, 0 * H:1 * H])
        f_g = jax.nn.sigmoid(gates[:, 1 * H:2 * H])
        g_g = jnp.tanh(gates[:, 2 * H:3 * H])
        o_g = jax.nn.sigmoid(gates[:, 3 * H:4 * H])
        c_new = f_g * c + i_g * g_g
        h_new = o_g * jnp.tanh(c_new)
        hseq_ref[s] = h_new.astype(hseq_ref.dtype)
        if mask_tail:
            # Keep state frozen on zero-padded tail steps of the last block.
            valid = (blk * block_t + s) < seq_len
            h_new = jnp.where(valid, h_new, h)
            c_new = jnp.where(valid, c_new, c)
        return (h_new, c_new)

    h, c = lax.fori_loop(0, block_t, step, (h_sc[...], c_sc[...]), unroll=True)
    h_sc[...] = h
    c_sc[...] = c
    # Resident output blocks (constant index_map): final writeback carries the
    # values from the last grid iteration, i.e. the true final state.
    hn_ref[...] = h.astype(hn_ref.dtype)
    cn_ref[...] = c.astype(cn_ref.dtype)


# ----------------------------------------------------------------------------
# Forward pass (mirrors CharDecoder.forward)
# ----------------------------------------------------------------------------
def char_decoder_forward(input_ids, params, dec_hidden=None, *, block_t=16):
    """Pallas implementation of CharDecoder.forward.

    input_ids: (L, B) int32
    params: dict with emb (V, E), w_ih (4H, E), w_hh (4H, H), b_ih (4H,),
            b_hh (4H,), w_proj (V, H), b_proj (V,)
    dec_hidden: optional tuple of (1, B, H) tensors.
    Returns: scores (L, B, V), (h_n (1, B, H), c_n (1, B, H))
    """
    L, B = input_ids.shape
    V, E = params["emb"].shape
    H = params["w_hh"].shape[1]
    assert L >= 1, "empty character sequence"

    if dec_hidden is None:
        h0 = jnp.zeros((B, H), jnp.float32)
        c0 = jnp.zeros((B, H), jnp.float32)
    else:
        h0 = dec_hidden[0][0].astype(jnp.float32)
        c0 = dec_hidden[1][0].astype(jnp.float32)

    # Timestep blocking (grid-overhead amortization).
    T = max(1, min(block_t, L))
    L_pad = pl.cdiv(L, T) * T

    # Glue / layout plumbing (not on the recurrent critical path).
    # NOTE: B is padded to 8 sublanes by the hardware regardless; supplying
    # B as a multiple of 8 uses those lanes for real work.
    embeds = params["emb"][input_ids].astype(jnp.float32)      # (L, B, E)
    if L_pad != L:
        embeds = jnp.pad(embeds, ((0, L_pad - L), (0, 0), (0, 0)))
    w_ih_t = params["w_ih"].T                                  # (E, 4H)
    w_hh_t = params["w_hh"].T                                  # (H, 4H)
    bias = (params["b_ih"] + params["b_hh"]).reshape(1, 4 * H)
    w_proj_t = params["w_proj"].T                              # (H, V)
    b_proj = params["b_proj"].reshape(1, V)

    # (1) Non-recurrent input pre-projection over ALL timesteps at once.
    x_gates = _dense(embeds.reshape(L_pad * B, E), w_ih_t, bias)
    x_gates = x_gates.reshape(L_pad, B, 4 * H)

    # (2) Sequential LSTM recurrence, T timesteps per grid iteration.
    kernel = functools.partial(
        _lstm_recurrence_kernel,
        hidden_size=H, block_t=T, seq_len=L, mask_tail=(L_pad != L))

    grid_spec = pltpu.PrefetchScalarGridSpec(
        num_scalar_prefetch=0,
        grid=(L_pad // T,),
        in_specs=[
            pl.BlockSpec((T, B, 4 * H), lambda i: (i, 0, 0)),  # x_gates slab
            # Grid-invariant operands (could be single-buffered on v7x to
            # save VMEM at large H; irrelevant at these sizes).
            pl.BlockSpec((H, 4 * H), lambda i: (0, 0)),        # W_hh^T
            pl.BlockSpec((B, H), lambda i: (0, 0)),            # h0
            pl.BlockSpec((B, H), lambda i: (0, 0)),            # c0
        ],
        out_specs=[
            pl.BlockSpec((T, B, H), lambda i: (i, 0, 0)),      # h_seq slab
            pl.BlockSpec((B, H), lambda i: (0, 0)),            # h_n
            pl.BlockSpec((B, H), lambda i: (0, 0)),            # c_n
        ],
        scratch_shapes=[
            pltpu.VMEM((B, H), jnp.float32),   # carried h
            pltpu.VMEM((B, H), jnp.float32),   # carried c
        ],
    )

    h_seq, h_n, c_n = pl.pallas_call(
        kernel,
        out_shape=(
            jax.ShapeDtypeStruct((L_pad, B, H), jnp.float32),
            jax.ShapeDtypeStruct((B, H), jnp.float32),
            jax.ShapeDtypeStruct((B, H), jnp.float32),
        ),
        grid_spec=grid_spec,
        compiler_params=pltpu.CompilerParams(
            dimension_semantics=("arbitrary",)),   # time blocks are sequential
    )(x_gates, w_hh_t, h0, c0)

    # (3) Non-recurrent vocabulary projection over ALL timesteps at once.
    scores = _dense(h_seq[:L].reshape(L * B, H), w_proj_t, b_proj)
    scores = scores.reshape(L, B, V)

    return scores, (h_n[None], c_n[None])


# ----------------------------------------------------------------------------
# Pure-JAX reference (mirrors torch nn.LSTM + Linear + Embedding)
# ----------------------------------------------------------------------------
def char_decoder_forward_ref(input_ids, params, dec_hidden=None):
    L, B = input_ids.shape
    H = params["w_hh"].shape[1]
    if dec_hidden is None:
        h0 = jnp.zeros((B, H), jnp.float32)
        c0 = jnp.zeros((B, H), jnp.float32)
    else:
        h0, c0 = dec_hidden[0][0], dec_hidden[1][0]
    embeds = params["emb"][input_ids]
    bias = params["b_ih"] + params["b_hh"]

    def step(carry, x_t):
        h, c = carry
        gates = x_t @ params["w_ih"].T + h @ params["w_hh"].T + bias
        i, f, g, o = jnp.split(gates, 4, axis=-1)
        c_new = jax.nn.sigmoid(f) * c + jax.nn.sigmoid(i) * jnp.tanh(g)
        h_new = jax.nn.sigmoid(o) * jnp.tanh(c_new)
        return (h_new, c_new), h_new

    (h_n, c_n), outputs = lax.scan(step, (h0, c0), embeds)
    scores = outputs @ params["w_proj"].T + params["b_proj"]
    return scores, (h_n[None], c_n[None])


def init_params(key, vocab_size, char_emb_size, hidden_size, pad_id=0):
    ks = jax.random.split(key, 7)
    scale = 0.1
    emb = scale * jax.random.normal(ks[0], (vocab_size, char_emb_size), jnp.float32)
    emb = emb.at[pad_id].set(0.0)   # padding_idx row is zeros in nn.Embedding
    return {
        "emb": emb,
        "w_ih": scale * jax.random.normal(ks[1], (4 * hidden_size, char_emb_size), jnp.float32),
        "w_hh": scale * jax.random.normal(ks[2], (4 * hidden_size, hidden_size), jnp.float32),
        "b_ih": scale * jax.random.normal(ks[3], (4 * hidden_size,), jnp.float32),
        "b_hh": scale * jax.random.normal(ks[4], (4 * hidden_size,), jnp.float32),
        "w_proj": scale * jax.random.normal(ks[5], (vocab_size, hidden_size), jnp.float32),
        "b_proj": scale * jax.random.normal(ks[6], (vocab_size,), jnp.float32),
    }


if __name__ == "__main__":
    # Small shapes consistent with CharDecoder.forward:
    #   input (length, batch), hidden_size H, char_embedding_size E, vocab V.
    L, B, H, E, V = 8, 4, 32, 50, 30
    key = jax.random.PRNGKey(0)
    k_par, k_ids, k_h, k_c = jax.random.split(key, 4)

    params = init_params(k_par, V, E, H, pad_id=0)
    input_ids = jax.random.randint(k_ids, (L, B), 0, V, dtype=jnp.int32)
    dec_hidden = (0.1 * jax.random.normal(k_h, (1, B, H), jnp.float32),
                  0.1 * jax.random.normal(k_c, (1, B, H), jnp.float32))

    scores, (h_n, c_n) = char_decoder_forward(input_ids, params, dec_hidden)
    jax.block_until_ready(scores)
    jax.block_until_ready(h_n)
    jax.block_until_ready(c_n)

    scores_r, (h_r, c_r) = char_decoder_forward_ref(input_ids, params, dec_hidden)
    assert scores.shape == (L, B, V) and h_n.shape == (1, B, H) and c_n.shape == (1, B, H)
    assert jnp.allclose(scores, scores_r, atol=1e-4, rtol=1e-4)
    assert jnp.allclose(h_n, h_r, atol=1e-4, rtol=1e-4)
    assert jnp.allclose(c_n, c_r, atol=1e-4, rtol=1e-4)

    # Exercise the non-divisible-length / tail-masking path as well.
    L2 = 11
    ids2 = jax.random.randint(jax.random.PRNGKey(1), (L2, B), 0, V, dtype=jnp.int32)
    s2, (h2, c2) = char_decoder_forward(ids2, params, dec_hidden, block_t=8)
    jax.block_until_ready(s2)
    s2r, (h2r, c2r) = char_decoder_forward_ref(ids2, params, dec_hidden)
    assert jnp.allclose(s2, s2r, atol=1e-4, rtol=1e-4)
    assert jnp.allclose(h2, h2r, atol=1e-4, rtol=1e-4)
    assert jnp.allclose(c2, c2r, atol=1e-4, rtol=1e-4)

    # TODO(synk): decode_greedy's python string assembly (id2char / takewhile)
    # is host-side logic with no Pallas equivalent; argmax-per-step could be
    # added in-kernel if needed.
    print("KERNEL_OK")
</pallas_src>

<mosaic_0001>
module attributes {stable_mosaic.version = 11 : i64} {
  func.func @_dense_kernel(%arg0: i32, %arg1: memref<32x50xf32, #tpu.memory_space<vmem>>, %arg2: memref<50x128xf32, #tpu.memory_space<vmem>>, %arg3: memref<1x128xf32, #tpu.memory_space<vmem>>, %arg4: memref<32x128xf32, #tpu.memory_space<vmem>>) attributes {dimension_semantics = [#tpu.dimension_semantics<parallel>], iteration_bounds = array<i64: 1>, scalar_prefetch = 0 : i64, scratch_operands = 0 : i64, tpu.core_type = #tpu.core_type<tc>, window_params = [{transform_indices = @transform_0, window_bounds = array<i64: 32, 50>}, {pipeline_mode = #tpu.pipeline_mode<synchronous>, transform_indices = @transform_1, window_bounds = array<i64: 50, 128>}, {pipeline_mode = #tpu.pipeline_mode<synchronous>, transform_indices = @transform_2, window_bounds = array<i64: 1, 128>}, {transform_indices = @transform_3, window_bounds = array<i64: 32, 128>}]} {
    %c0 = arith.constant 0 : index
    %c0_0 = arith.constant 0 : index
    %0 = vector.load %arg1[%c0, %c0_0] : memref<32x50xf32, #tpu.memory_space<vmem>>, vector<32x50xf32>
    %c0_1 = arith.constant 0 : index
    %c0_2 = arith.constant 0 : index
    %1 = vector.load %arg2[%c0_1, %c0_2] : memref<50x128xf32, #tpu.memory_space<vmem>>, vector<50x128xf32>
    %cst = arith.constant dense<0.000000e+00> : vector<32x128xf32>
    %2 = tpu.matmul %0, %1, %cst {dimension_numbers = #tpu.dot_dimension_numbers<[1], [0], [0], [1], [0, 0, 1, 1], [], []>} : vector<32x50xf32>, vector<50x128xf32>, vector<32x128xf32> -> vector<32x128xf32>
    %c0_3 = arith.constant 0 : index
    %c0_4 = arith.constant 0 : index
    %3 = vector.load %arg3[%c0_3, %c0_4] : memref<1x128xf32, #tpu.memory_space<vmem>>, vector<1x128xf32>
    %4 = vector.broadcast %3 : vector<1x128xf32> to vector<32x128xf32>
    %5 = arith.addf %2, %4 : vector<32x128xf32>
    %c0_5 = arith.constant 0 : index
    %c0_6 = arith.constant 0 : index
    %6 = vector.load %arg4[%c0_5, %c0_6] : memref<32x128xf32, #tpu.memory_space<vmem>>, vector<32x128xf32>
    tpu.vector_store %arg4[%c0_5, %c0_6], %5 {strides = array<i32>} : memref<32x128xf32, #tpu.memory_space<vmem>>, vector<32x128xf32>,
    return
  }
  func.func @transform_0(%arg0: i32) -> (i32, i32) {
    %c0_i32 = arith.constant 0 : i32
    %c0_i32_0 = arith.constant 0 : i32
    return %arg0, %c0_i32 : i32, i32
  }
  func.func @transform_1(%arg0: i32) -> (i32, i32) {
    %c0_i32 = arith.constant 0 : i32
    %c0_i32_0 = arith.constant 0 : i32
    %c0_i32_1 = arith.constant 0 : i32
    return %c0_i32, %c0_i32_0 : i32, i32
  }
  func.func @transform_2(%arg0: i32) -> (i32, i32) {
    %c0_i32 = arith.constant 0 : i32
    %c0_i32_0 = arith.constant 0 : i32
    %c0_i32_1 = arith.constant 0 : i32
    return %c0_i32, %c0_i32_0 : i32, i32
  }
  func.func @transform_3(%arg0: i32) -> (i32, i32) {
    %c0_i32 = arith.constant 0 : i32
    %c0_i32_0 = arith.constant 0 : i32
    return %arg0, %c0_i32 : i32, i32
  }
}

</mosaic_0001>

<llo_original>
// kernel: tpu_custom_call.1
$region0: #{tpu_custom_call.1}
  #allocation0 [shape = 'u32[]', space=smem, size = 0x4, offset = 0x4, fixed_abs, tag = 'smem constant byte address 0x4 - core index']
  #allocation1 [shape = 'u32[144,128]{1,0:T(1,128)}', space=vmem, size = 0x12000, scoped, tag = 'internal scratch']
  %s0 = inlined_call_operand.hbm [shape: f32[32,50], index: 0, kind: input, shape index: {}]
  %s1 = inlined_call_operand.hbm [shape: f32[50,128], index: 1, kind: input, shape index: {}]
  %s2 = inlined_call_operand.vmem [shape: f32[1,128], index: 2, kind: input, shape index: {}]
  %s3 = inlined_call_operand.hbm [shape: f32[32,128], index: 3, kind: output, shape index: {}]
  %s4 = sld [smem:[#allocation0]]
  $region30: #{tpu_custom_call.1} parent=0
    _
  %s6 = ssub.s32 1, %s4
  %s7 = scalar_select 0, %s6, %s4
  $region1: #{tpu_custom_call.1} parent=0
    #allocation2 [shape = 'u8[16384]{0}', space=vmem, size = 0x4000, scoped, tag = 'input window, operand 0, single buffered']
    #allocation3 [shape = 's32[1]{0}', space=sflag, size = 0x4, scoped, tag = 'scoped memory for tpu_custom_call.1']
    #allocation4 [shape = 's32[1]{0}', space=sflag, size = 0x4, scoped, tag = 'scoped memory for tpu_custom_call.1']
    #allocation5 [shape = 'u8[28672]{0}', space=vmem, size = 0x7000, scoped, tag = 'input window, operand 1, single buffered']
    #allocation6 [shape = 's32[1]{0}', space=sflag, size = 0x4, scoped, tag = 'scoped memory for tpu_custom_call.1']
    #allocation7 [shape = 'u8[16384]{0}', space=vmem, size = 0x4000, scoped, tag = 'output window, operand 0, single buffered']
    %8 = vsyncpa [#allocation3], 0
    %9 = vsyncpa [#allocation6], 0
    %10 = vsyncpa [#allocation4], 0
    // Predicated region
    $region2: #{tpu_custom_call.1} parent=1 // pred_check
      _
    $region3: #{tpu_custom_call.1} parent=1 // pred_check_branch
      %12 = sbr.rel (0) target = $region5
    $region4: #{tpu_custom_call.1} parent=1 // pred_region
      %s14 = ssub.s32 512, 512
      %15 = vsyncadd [#allocation3], %s14
      %s16 = sshll.u32 [#allocation2], 4
      %s17 = int_to_ptr.vmem [resolvable:$true] %s16
      %22 = dma.hbm_to_vmem [thread:$0]  %s0, 512, %s17, [#allocation3], 128, 128, 8
    $region5: #{tpu_custom_call.1} parent=1 // pred_fallthru
      _
    // Predicated region
    $region6: #{tpu_custom_call.1} parent=1 // pred_check
      _
    $region7: #{tpu_custom_call.1} parent=1 // pred_check_branch
      %24 = sbr.rel (0) target = $region9
    $region8: #{tpu_custom_call.1} parent=1 // pred_region
      %s26 = ssub.s32 896, 896
      %27 = vsyncadd [#allocation6], %s26
      %s28 = sshll.u32 [#allocation5], 4
      %s29 = int_to_ptr.vmem [resolvable:$true] %s28
      %34 = dma.hbm_to_vmem [thread:$0]  %s1, 896, %s29, [#allocation6], 128, 128, 8
    $region9: #{tpu_custom_call.1} parent=1 // pred_fallthru
      _
    // Predicated region
    $region10: #{tpu_custom_call.1} parent=1 // pred_check
      _
    $region11: #{tpu_custom_call.1} parent=1 // pred_check_branch
      %36 = sbr.rel (0) target = $region13
    $region12: #{tpu_custom_call.1} parent=1 // pred_region
      _
    $region13: #{tpu_custom_call.1} parent=1 // pred_fallthru
      _
    // Predicated region
    $region14: #{tpu_custom_call.1} parent=1 // pred_check
      _
    $region15: #{tpu_custom_call.1} parent=1 // pred_check_branch
      %38 = sbr.rel (0) target = $region17
    $region16: #{tpu_custom_call.1} parent=1 // pred_region
      %39 = dma.done [#allocation3], 512
    $region17: #{tpu_custom_call.1} parent=1 // pred_fallthru
      _
    // Predicated region
    $region18: #{tpu_custom_call.1} parent=1 // pred_check
      _
    $region19: #{tpu_custom_call.1} parent=1 // pred_check_branch
      %41 = sbr.rel (0) target = $region21
    $region20: #{tpu_custom_call.1} parent=1 // pred_region
      %42 = dma.done [#allocation6], 896
    $region21: #{tpu_custom_call.1} parent=1 // pred_fallthru
      _
    %v43 = vld [vmem:[#allocation2] sm:$0xff]
    %v44 = vld [vmem:[#allocation2 + $0x8] sm:$0xff]
    %v45 = vld [vmem:[#allocation2 + $0x10] sm:$0xff]
    %v46 = vld [vmem:[#allocation2 + $0x18] sm:$0xff]
    %v47 = vld [vmem:[#allocation5] sm:$0xff]
    %v48 = vld [vmem:[#allocation5 + $0x8] sm:$0xff]
    %v49 = vld [vmem:[#allocation5 + $0x10] sm:$0xff]
    %v50 = vld [vmem:[#allocation5 + $0x18] sm:$0xff]
    %v51 = vld [vmem:[#allocation5 + $0x20] sm:$0xff]
    %v52 = vld [vmem:[#allocation5 + $0x28] sm:$0xff]
    %v53 = vld [vmem:[#allocation5 + $0x30] sm:$0x3]
    %v54 = vld [vmem:[%s2] sm:$0x1]
    %v56 = vlaneseq
    %v57 = vshrl.u32 %v56, 7
    %v58 = vsub.s32 0, %v57
    %v59 = vrot.slane %v54, %v58
    %vm61 = vcmask 408576
    %v63 = vsel %vm61, %v43, 0
    %v66 = vsel %vm61, %v44, 0
    %v69 = vsel %vm61, %v45, 0
    %v72 = vsel %vm61, %v46, 0
    %vm74 = vcmask 1041408
    %v76 = vsel %vm74, %v53, 0
    %78 = vmatprep.subr.mxu0 0.0
    %79 = vmatpush1.msra.mxu0 %v47
    %80 = vmatprep.subr.mxu0 0.0
    %81 = vmatpush1.msra.mxu0 %v48
    %82 = vmatprep.subr.mxu0 0.0
    %83 = vmatpush1.msra.mxu0 %v49
    %84 = vmatprep.subr.mxu0 0.0
    %85 = vmatpush1.msra.mxu0 %v50
    %86 = vmatprep.subr.mxu0 0.0
    %87 = vmatpush1.msra.mxu0 %v51
    %88 = vmatprep.subr.mxu0 0.0
    %89 = vmatpush1.msra.mxu0 %v52
    %90 = vmatprep.subr.mxu0 0.0
    %91 = vmatpush1.msra.mxu0 %v76
    %92 = vmatprep.subr.mxu0 0.0
    %93 = vmatpush1.msra.mxu0 0.0
    %94 = vmatprep.subr.mxu0 0.0
    %95 = vmatpush1.msra.mxu0 0.0
    %96 = vmatprep.subr.mxu0 0.0
    %97 = vmatpush1.msra.mxu0 0.0
    %98 = vmatprep.subr.mxu0 0.0
    %99 = vmatpush1.msra.mxu0 0.0
    %100 = vmatprep.subr.mxu0 0.0
    %101 = vmatpush1.msra.mxu0 0.0
    %102 = vmatprep.subr.mxu0 0.0
    %103 = vmatpush1.msra.mxu0 0.0
    %104 = vmatprep.subr.mxu0 0.0
    %105 = vmatpush1.msra.mxu0 0.0
    %106 = vmatprep.subr.mxu0 0.0
    %107 = vmatpush1.msra.mxu0 0.0
    %108 = vmatprep.subr.mxu0 0.0
    %109 = vmatpush1.msra.mxu0 0.0
    %110 = vmatprep.subr.mxu0 0.0
    %111 = vmatpush1.msra.mxu0 0.0
    %112 = vmatprep.subr.mxu0 0.0
    %113 = vmatpush1.msra.mxu0 0.0
    %114 = vmatprep.subr.mxu0 0.0
    %115 = vmatpush1.msra.mxu0 0.0
    %116 = vmatprep.subr.mxu0 0.0
    %117 = vmatpush1.msra.mxu0 0.0
    %118 = vmatprep.subr.mxu0 0.0
    %119 = vmatpush1.msra.mxu0 0.0
    %120 = vmatprep.subr.mxu0 0.0
    %121 = vmatpush1.msra.mxu0 0.0
    %122 = vmatprep.subr.mxu0 0.0
    %123 = vmatpush1.msra.mxu0 0.0
    %124 = vmatprep.subr.mxu0 0.0
    %125 = vmatpush1.msra.mxu0 0.0
    %126 = vmatprep.subr.mxu0 0.0
    %127 = vmatpush1.msra.mxu0 0.0
    %128 = vmatprep.subr.mxu0 0.0
    %129 = vmatpush1.msra.mxu0 0.0
    %130 = vmatprep.subr.mxu0 0.0
    %131 = vmatpush1.msra.mxu0 0.0
    %132 = vmatprep.subr.mxu0 0.0
    %133 = vmatpush1.msra.mxu0 0.0
    %134 = vmatprep.subr.mxu0 0.0
    %135 = vmatpush1.msra.mxu0 0.0
    %136 = vmatprep.subr.mxu0 0.0
    %137 = vmatpush1.msra.mxu0 0.0
    %138 = vmatprep.subr.mxu0 0.0
    %139 = vmatpush1.msra.mxu0 0.0
    %140 = vmatprep.subr.mxu0 0.0
    %141 = vmatpush1.msra.mxu0 0.0
    %142 = vmatprep.mubr.f32.mxu0 0.0
    %143 = vmatmul.mubr.f32.gmra.mrb[0].mxu0 %v63
    %v144 = vpop.f32.mrb[0].mxu0
    %v145 = vadd.f32 %v59, %v144
    %v146 = vpop.f32.mrb[0].mxu0
    %147 = vmatprep.mubr.f32.mxu0 0.0
    %148 = vmatmul.mubr.f32.gmra.mrb[0].mxu0 %v66
    %v149 = vpop.f32.mrb[0].mxu0
    %v150 = vadd.f32 %v59, %v149
    %v151 = vpop.f32.mrb[0].mxu0
    %152 = vmatprep.mubr.f32.mxu0 0.0
    %153 = vmatmul.mubr.f32.gmra.mrb[0].mxu0 %v69
    %v154 = vpop.f32.mrb[0].mxu0
    %v155 = vadd.f32 %v59, %v154
    %v156 = vpop.f32.mrb[0].mxu0
    %157 = vmatprep.mubr.f32.mxu0 0.0
    %158 = vmatmul.mubr.f32.gmra.mrb[0].mxu0 %v72
    %v159 = vpop.f32.mrb[0].mxu0
    %v160 = vadd.f32 %v59, %v159
    %v161 = vpop.f32.mrb[0].mxu0
    %162 = vdwg.mxu0
    %163 = vst [vmem:[#allocation7] sm:$0xff] %v145
    %164 = vst [vmem:[#allocation7 + $0x8] sm:$0xff] %v150
    %165 = vst [vmem:[#allocation7 + $0x10] sm:$0xff] %v155
    %166 = vst [vmem:[#allocation7 + $0x18] sm:$0xff] %v160
    // Predicated region
    $region22: #{tpu_custom_call.1} parent=1 // pred_check
      _
    $region23: #{tpu_custom_call.1} parent=1 // pred_check_branch
      %168 = sbr.rel (0) target = $region25
    $region24: #{tpu_custom_call.1} parent=1 // pred_region
      %s170 = ssub.s32 512, 512
      %171 = vsyncadd [#allocation4], %s170
      %s172 = sshll.u32 [#allocation7], 4
      %s173 = int_to_ptr.vmem [resolvable:$true] %s172
      %178 = dma.vmem_to_hbm [thread:$0]  %s173, 512, %s3, [#allocation4], 128, 128, 8
    $region25: #{tpu_custom_call.1} parent=1 // pred_fallthru
      _
    // Predicated region
    $region26: #{tpu_custom_call.1} parent=1 // pred_check
      _
    $region27: #{tpu_custom_call.1} parent=1 // pred_check_branch
      %180 = sbr.rel (0) target = $region29
    $region28: #{tpu_custom_call.1} parent=1 // pred_region
      %181 = dma.done [#allocation4], 512
    $region29: #{tpu_custom_call.1} parent=1 // pred_fallthru
      _
    %182 = vsyncpa [#allocation3], 1
    %183 = vsyncpa [#allocation6], 1
    %184 = vsyncpa [#allocation4], 1

</llo_original>
